<compile_context>
chip_gen: v7x
topology: tpu7x:2x2x1
jax: 0.10.0
libtpu: 0.0.40
codegen_flags: <defaults>
</compile_context>

<pallas_src>
import jax
import jax.numpy as jnp
from jax.experimental import pallas as pl
from jax.experimental.pallas import tpu as pltpu

LANE = 128            # TPU lane width (hidden/output feature padding target)
SUBLANE_BF16 = 16     # sublane multiple for bf16
SINGLE_TILE_MAX = 512 # below this many (padded) rows: one grid-less call
TILE_B_MAX = 1024     # max batch-tile rows per grid step (mem-bound sweet spot)


def _round_up(n, m):
    return ((n + m - 1) // m) * m


def _cdiv(a, b):
    return (a + b - 1) // b


def make_dqn_kernel(hid_pad, out_pad):
    """Fused 4-layer MLP on one batch tile; weights/biases are VMEM-resident."""
    # Static lane offsets into the concatenated weight / bias slabs.
    w_off2, w_off3, w_off4 = 0, hid_pad, 2 * hid_pad
    b_off1, b_off2, b_off3, b_off4 = 0, hid_pad, 2 * hid_pad, 3 * hid_pad

    def kernel(x_ref, w1_ref, w234_ref, b_ref, o_ref):
        x = x_ref[...]  # bf16 [tile_b, in_pad]

        # Layer 1: Linear + ReLU (f32 accumulate, bf16 for the next MXU pass).
        h = jnp.dot(x, w1_ref[...], preferred_element_type=jnp.float32)
        h = jnp.maximum(h + b_ref[:, b_off1:b_off1 + hid_pad], 0.0)
        h = h.astype(jnp.bfloat16)

        # Layer 2: Linear + ReLU.
        h = jnp.dot(h, w234_ref[:, w_off2:w_off2 + hid_pad],
                    preferred_element_type=jnp.float32)
        h = jnp.maximum(h + b_ref[:, b_off2:b_off2 + hid_pad], 0.0)
        h = h.astype(jnp.bfloat16)

        # Layer 3: Linear + ReLU.
        h = jnp.dot(h, w234_ref[:, w_off3:w_off3 + hid_pad],
                    preferred_element_type=jnp.float32)
        h = jnp.maximum(h + b_ref[:, b_off3:b_off3 + hid_pad], 0.0)
        h = h.astype(jnp.bfloat16)

        # Layer 4: Linear (no activation).
        out = jnp.dot(h, w234_ref[:, w_off4:w_off4 + out_pad],
                      preferred_element_type=jnp.float32)
        out = out + b_ref[:, b_off4:b_off4 + out_pad]

        o_ref[...] = out.astype(o_ref.dtype)

    return kernel


def prepare_dqn_params(params, input_nodes, hidden_nodes, output_nodes):
    """Pad + consolidate weights/biases for the kernel.

    w1   : [in_pad, hid_pad]               bf16   (in_pad = round_up(in, 16))
    w234 : [hid_pad, 2*hid_pad + out_pad]  bf16   (w2 | w3 | w4 along lanes)
    b_all: [1, 3*hid_pad + out_pad]        f32    (b1 | b2 | b3 | b4)
    Zero padding keeps the math exact.
    """
    in_pad = _round_up(input_nodes, SUBLANE_BF16)
    hid_pad = _round_up(hidden_nodes, LANE)
    out_pad = _round_up(output_nodes, LANE)

    def pad_w(w, r_pad, c_pad):
        fi, fo = w.shape
        wp = jnp.zeros((r_pad, c_pad), jnp.bfloat16)
        return wp.at[:fi, :fo].set(w.astype(jnp.bfloat16))

    def pad_b(b, c_pad):
        fo = b.shape[-1]
        bp = jnp.zeros((1, c_pad), jnp.float32)
        return bp.at[:, :fo].set(b.reshape(1, fo).astype(jnp.float32))

    w1 = pad_w(params["w1"], in_pad, hid_pad)
    w234 = jnp.concatenate(
        [pad_w(params["w2"], hid_pad, hid_pad),
         pad_w(params["w3"], hid_pad, hid_pad),
         pad_w(params["w4"], hid_pad, out_pad)], axis=1)
    b_all = jnp.concatenate(
        [pad_b(params["b1"], hid_pad),
         pad_b(params["b2"], hid_pad),
         pad_b(params["b3"], hid_pad),
         pad_b(params["b4"], out_pad)], axis=1)

    return {
        "w1": w1, "w234": w234, "b_all": b_all,
        "dims": (input_nodes, hidden_nodes, output_nodes, in_pad, hid_pad, out_pad),
    }


def dqn_forward(x, prepared):
    """x: [B, input_nodes] float32. prepared: output of prepare_dqn_params."""
    in_nodes, _, out_nodes, in_pad, hid_pad, out_pad = prepared["dims"]
    w1, w234, b_all = prepared["w1"], prepared["w234"], prepared["b_all"]
    B = x.shape[0]

    # Batch tiling: small batches -> single grid-less call; large batches ->
    # >=2 tiles of <=TILE_B_MAX rows (v7x megacore sharding, low padding waste).
    b_pad = _round_up(max(B, 1), SUBLANE_BF16)
    if b_pad <= SINGLE_TILE_MAX:
        tile_b, num_tiles = b_pad, 1
    else:
        tile_b = min(TILE_B_MAX, _round_up(_cdiv(b_pad, 2), SUBLANE_BF16))
        b_pad = _round_up(b_pad, tile_b)
        num_tiles = b_pad // tile_b

    # Narrow (non-128-padded) bf16 input; pad only if batch/feature need it.
    if (b_pad, in_pad) == (B, in_nodes):
        x_p = x.astype(jnp.bfloat16)
    else:
        x_p = jnp.zeros((b_pad, in_pad), jnp.bfloat16)
        x_p = x_p.at[:B, :in_nodes].set(x.astype(jnp.bfloat16))

    kernel = make_dqn_kernel(hid_pad, out_pad)

    flops = 2 * b_pad * (in_pad * hid_pad + 2 * hid_pad * hid_pad + hid_pad * out_pad)
    bytes_accessed = (x_p.size * 2 + w1.size * 2 + w234.size * 2
                      + b_all.size * 4 + b_pad * out_pad * 4)
    cost = pl.CostEstimate(flops=int(flops), transcendentals=0,
                           bytes_accessed=int(bytes_accessed))

    out_shape = jax.ShapeDtypeStruct((b_pad, out_pad), jnp.float32)

    if num_tiles == 1:
        # Grid-less call: whole arrays in VMEM, no pipeline prologue/epilogue.
        out_p = pl.pallas_call(
            kernel, out_shape=out_shape, cost_estimate=cost,
        )(x_p, w1, w234, b_all)
    else:
        def resident(a):  # same block every step -> stays VMEM-resident
            return pl.BlockSpec(a.shape, lambda i: (0, 0))

        out_p = pl.pallas_call(
            kernel,
            out_shape=out_shape,
            grid=(num_tiles,),
            in_specs=[
                pl.BlockSpec((tile_b, in_pad), lambda i: (i, 0)),  # batch-tiled x
                resident(w1), resident(w234), resident(b_all),
            ],
            out_specs=pl.BlockSpec((tile_b, out_pad), lambda i: (i, 0)),
            compiler_params=pltpu.CompilerParams(
                dimension_semantics=("parallel",)),  # v7x: shard tiles over both TCs
            cost_estimate=cost,
        )(x_p, w1, w234, b_all)

    # Slice away batch / lane padding.
    return out_p[:B, :out_nodes]


def init_dqn_params(key, input_nodes, hidden_nodes, output_nodes):
    """Deterministic init mimicking PyTorch Linear default: U(-1/sqrt(fan_in), +)."""
    def linear_init(k, fan_in, fan_out):
        kw, kb = jax.random.split(k)
        bound = 1.0 / jnp.sqrt(jnp.float32(fan_in))
        # stored as [in, out] so the kernel does x @ W (== x @ W_pt.T)
        w = jax.random.uniform(kw, (fan_in, fan_out), jnp.float32, -bound, bound)
        b = jax.random.uniform(kb, (fan_out,), jnp.float32, -bound, bound)
        return w, b

    k1, k2, k3, k4 = jax.random.split(key, 4)
    w1, b1 = linear_init(k1, input_nodes, hidden_nodes)
    w2, b2 = linear_init(k2, hidden_nodes, hidden_nodes)
    w3, b3 = linear_init(k3, hidden_nodes, hidden_nodes)
    w4, b4 = linear_init(k4, hidden_nodes, output_nodes)
    return {"w1": w1, "b1": b1, "w2": w2, "b2": b2,
            "w3": w3, "b3": b3, "w4": w4, "b4": b4}


def dqn_forward_ref_f32(x, p):
    """Pure-JAX f32 reference (eval-mode dropout = identity)."""
    h = jnp.maximum(x @ p["w1"] + p["b1"], 0.0)
    h = jnp.maximum(h @ p["w2"] + p["b2"], 0.0)
    h = jnp.maximum(h @ p["w3"] + p["b3"], 0.0)
    return h @ p["w4"] + p["b4"]


def dqn_forward_ref_bf16(x, p):
    """Pure-JAX reference mirroring the kernel's dtype flow (bf16 MXU, f32 accum)."""
    def layer(h, w, b, relu):
        y = jnp.dot(h, w.astype(jnp.bfloat16),
                    preferred_element_type=jnp.float32) + b
        if relu:
            y = jnp.maximum(y, 0.0).astype(jnp.bfloat16)
        return y
    h = layer(x.astype(jnp.bfloat16), p["w1"], p["b1"], True)
    h = layer(h, p["w2"], p["b2"], True)
    h = layer(h, p["w3"], p["b3"], True)
    return layer(h, p["w4"], p["b4"], False)


if __name__ == "__main__":
    # Small shapes consistent with the module's constructor.
    batch = 2
    input_nodes = 16
    hidden_nodes = 32
    output_nodes = 4
    dropout_p = 0.1  # unused at inference (identity)

    key = jax.random.PRNGKey(0)
    k_params, k_x, k_x2 = jax.random.split(key, 3)

    params = init_dqn_params(k_params, input_nodes, hidden_nodes, output_nodes)
    prepared = prepare_dqn_params(params, input_nodes, hidden_nodes, output_nodes)

    # --- small batch: grid-less single-tile path ---
    x = jax.random.normal(k_x, (batch, input_nodes), jnp.float32)
    out = dqn_forward(x, prepared)
    out = jax.block_until_ready(out)
    assert out.shape == (batch, output_nodes)

    ref_bf16 = dqn_forward_ref_bf16(x, params)
    assert jnp.allclose(out, ref_bf16, atol=1e-2, rtol=1e-2), \
        "mismatch vs bf16-mirrored JAX reference (small batch)"
    ref_f32 = dqn_forward_ref_f32(x, params)
    assert jnp.allclose(out, ref_f32, atol=1e-1, rtol=1e-1), \
        "mismatch vs f32 JAX reference (small batch)"

    # --- larger batch: tiled path (>=2 tiles, parallel grid axis) ---
    big_batch = 2048
    x2 = jax.random.normal(k_x2, (big_batch, input_nodes), jnp.float32)
    out2 = dqn_forward(x2, prepared)
    out2 = jax.block_until_ready(out2)
    assert out2.shape == (big_batch, output_nodes)

    ref2_bf16 = dqn_forward_ref_bf16(x2, params)
    assert jnp.allclose(out2, ref2_bf16, atol=3e-2, rtol=3e-2), \
        "mismatch vs bf16-mirrored JAX reference (large batch)"
    ref2_f32 = dqn_forward_ref_f32(x2, params)
    assert jnp.allclose(out2, ref2_f32, atol=1e-1, rtol=1e-1), \
        "mismatch vs f32 JAX reference (large batch)"

    print("KERNEL_OK")
</pallas_src>

<mosaic_0001>
module attributes {stable_mosaic.version = 11 : i64} {
  func.func @kernel(%arg0: memref<16x16xbf16, #tpu.memory_space<vmem>>, %arg1: memref<16x128xbf16, #tpu.memory_space<vmem>>, %arg2: memref<128x384xbf16, #tpu.memory_space<vmem>>, %arg3: memref<1x512xf32, #tpu.memory_space<vmem>>, %arg4: memref<16x128xf32, #tpu.memory_space<vmem>>) attributes {dimension_semantics = [], scalar_prefetch = 0 : i64, scratch_operands = 0 : i64, tpu.core_type = #tpu.core_type<tc>} {
    %c0 = arith.constant 0 : index
    %c0_0 = arith.constant 0 : index
    %0 = vector.load %arg0[%c0, %c0_0] : memref<16x16xbf16, #tpu.memory_space<vmem>>, vector<16x16xbf16>
    %c0_1 = arith.constant 0 : index
    %c0_2 = arith.constant 0 : index
    %1 = vector.load %arg1[%c0_1, %c0_2] : memref<16x128xbf16, #tpu.memory_space<vmem>>, vector<16x128xbf16>
    %cst = arith.constant dense<0.000000e+00> : vector<16x128xf32>
    %2 = tpu.matmul %0, %1, %cst {dimension_numbers = #tpu.dot_dimension_numbers<[1], [0], [0], [1], [0, 0, 1, 1], [], []>} : vector<16x16xbf16>, vector<16x128xbf16>, vector<16x128xf32> -> vector<16x128xf32>
    %c0_3 = arith.constant 0 : index
    %c0_4 = arith.constant 0 : index
    %3 = vector.load %arg3[%c0_3, %c0_4] : memref<1x512xf32, #tpu.memory_space<vmem>>, vector<1x128xf32>
    %4 = vector.broadcast %3 : vector<1x128xf32> to vector<16x128xf32>
    %5 = arith.addf %2, %4 : vector<16x128xf32>
    %cst_5 = arith.constant 0.000000e+00 : f32
    %6 = vector.broadcast %cst_5 : f32 to vector<16x128xf32>
    %7 = arith.maximumf %5, %6 : vector<16x128xf32>
    %8 = arith.truncf %7 : vector<16x128xf32> to vector<16x128xbf16>
    %c0_6 = arith.constant 0 : index
    %c0_7 = arith.constant 0 : index
    %9 = vector.load %arg2[%c0_6, %c0_7] : memref<128x384xbf16, #tpu.memory_space<vmem>>, vector<128x128xbf16>
    %cst_8 = arith.constant dense<0.000000e+00> : vector<16x128xf32>
    %10 = tpu.matmul %8, %9, %cst_8 {dimension_numbers = #tpu.dot_dimension_numbers<[1], [0], [0], [1], [0, 0, 1, 1], [], []>} : vector<16x128xbf16>, vector<128x128xbf16>, vector<16x128xf32> -> vector<16x128xf32>
    %c0_9 = arith.constant 0 : index
    %c128 = arith.constant 128 : index
    %11 = vector.load %arg3[%c0_9, %c128] : memref<1x512xf32, #tpu.memory_space<vmem>>, vector<1x128xf32>
    %12 = vector.broadcast %11 : vector<1x128xf32> to vector<16x128xf32>
    %13 = arith.addf %10, %12 : vector<16x128xf32>
    %cst_10 = arith.constant 0.000000e+00 : f32
    %14 = vector.broadcast %cst_10 : f32 to vector<16x128xf32>
    %15 = arith.maximumf %13, %14 : vector<16x128xf32>
    %16 = arith.truncf %15 : vector<16x128xf32> to vector<16x128xbf16>
    %c0_11 = arith.constant 0 : index
    %c128_12 = arith.constant 128 : index
    %17 = vector.load %arg2[%c0_11, %c128_12] : memref<128x384xbf16, #tpu.memory_space<vmem>>, vector<128x128xbf16>
    %cst_13 = arith.constant dense<0.000000e+00> : vector<16x128xf32>
    %18 = tpu.matmul %16, %17, %cst_13 {dimension_numbers = #tpu.dot_dimension_numbers<[1], [0], [0], [1], [0, 0, 1, 1], [], []>} : vector<16x128xbf16>, vector<128x128xbf16>, vector<16x128xf32> -> vector<16x128xf32>
    %c0_14 = arith.constant 0 : index
    %c256 = arith.constant 256 : index
    %19 = vector.load %arg3[%c0_14, %c256] : memref<1x512xf32, #tpu.memory_space<vmem>>, vector<1x128xf32>
    %20 = vector.broadcast %19 : vector<1x128xf32> to vector<16x128xf32>
    %21 = arith.addf %18, %20 : vector<16x128xf32>
    %cst_15 = arith.constant 0.000000e+00 : f32
    %22 = vector.broadcast %cst_15 : f32 to vector<16x128xf32>
    %23 = arith.maximumf %21, %22 : vector<16x128xf32>
    %24 = arith.truncf %23 : vector<16x128xf32> to vector<16x128xbf16>
    %c0_16 = arith.constant 0 : index
    %c256_17 = arith.constant 256 : index
    %25 = vector.load %arg2[%c0_16, %c256_17] : memref<128x384xbf16, #tpu.memory_space<vmem>>, vector<128x128xbf16>
    %cst_18 = arith.constant dense<0.000000e+00> : vector<16x128xf32>
    %26 = tpu.matmul %24, %25, %cst_18 {dimension_numbers = #tpu.dot_dimension_numbers<[1], [0], [0], [1], [0, 0, 1, 1], [], []>} : vector<16x128xbf16>, vector<128x128xbf16>, vector<16x128xf32> -> vector<16x128xf32>
    %c0_19 = arith.constant 0 : index
    %c384 = arith.constant 384 : index
    %27 = vector.load %arg3[%c0_19, %c384] : memref<1x512xf32, #tpu.memory_space<vmem>>, vector<1x128xf32>
    %28 = vector.broadcast %27 : vector<1x128xf32> to vector<16x128xf32>
    %29 = arith.addf %26, %28 : vector<16x128xf32>
    %c0_20 = arith.constant 0 : index
    %c0_21 = arith.constant 0 : index
    %30 = vector.load %arg4[%c0_20, %c0_21] : memref<16x128xf32, #tpu.memory_space<vmem>>, vector<16x128xf32>
    tpu.vector_store %arg4[%c0_20, %c0_21], %29 {strides = array<i32>} : memref<16x128xf32, #tpu.memory_space<vmem>>, vector<16x128xf32>,
    return
  }
}

</mosaic_0001>

<llo_original>
// kernel: tpu_custom_call.1
$region0: #{tpu_custom_call.1}
  #allocation0 [shape = 'u32[]', space=smem, size = 0x4, offset = 0x4, fixed_abs, tag = 'smem constant byte address 0x4 - core index']
  #allocation1 [shape = 'u32[144,128]{1,0:T(1,128)}', space=vmem, size = 0x12000, scoped, tag = 'internal scratch']
  %s0 = inlined_call_operand.hbm [shape: bf16[16,16], index: 0, kind: input, shape index: {}]
  %s1 = inlined_call_operand.hbm [shape: bf16[16,128], index: 1, kind: input, shape index: {}]
  %s2 = inlined_call_operand.hbm [shape: bf16[128,384], index: 2, kind: input, shape index: {}]
  %s3 = inlined_call_operand.vmem [shape: f32[1,512], index: 3, kind: input, shape index: {}]
  %s4 = inlined_call_operand.hbm [shape: f32[16,128], index: 4, kind: output, shape index: {}]
  %s5 = sld [smem:[#allocation0]]
  $region38: #{tpu_custom_call.1} parent=0
    _
  %s7 = ssub.s32 1, %s5
  %s8 = scalar_select 0, %s7, %s5
  $region1: #{tpu_custom_call.1} parent=0
    #allocation2 [shape = 'u8[4096]{0}', space=vmem, size = 0x1000, scoped, tag = 'input window, operand 0, single buffered']
    #allocation3 [shape = 's32[1]{0}', space=sflag, size = 0x4, scoped, tag = 'scoped memory for tpu_custom_call.1']
    #allocation4 [shape = 's32[1]{0}', space=sflag, size = 0x4, scoped, tag = 'scoped memory for tpu_custom_call.1']
    #allocation5 [shape = 'u8[4096]{0}', space=vmem, size = 0x1000, scoped, tag = 'input window, operand 1, single buffered']
    #allocation6 [shape = 's32[1]{0}', space=sflag, size = 0x4, scoped, tag = 'scoped memory for tpu_custom_call.1']
    #allocation7 [shape = 'u8[98304]{0}', space=vmem, size = 0x18000, scoped, tag = 'input window, operand 2, single buffered']
    #allocation8 [shape = 'u8[8192]{0}', space=vmem, size = 0x2000, scoped, tag = 'output window, operand 0, single buffered']
    %9 = vsyncpa [#allocation3], 0
    %10 = vsyncpa [#allocation6], 0
    %11 = vsyncpa [#allocation4], 0
    // Predicated region
    $region2: #{tpu_custom_call.1} parent=1 // pred_check
      _
    $region3: #{tpu_custom_call.1} parent=1 // pred_check_branch
      %13 = sbr.rel (0) target = $region5
    $region4: #{tpu_custom_call.1} parent=1 // pred_region
      %s15 = ssub.s32 128, 128
      %16 = vsyncadd [#allocation3], %s15
      %s17 = sshll.u32 [#allocation2], 4
      %s18 = int_to_ptr.vmem [resolvable:$true] %s17
      %23 = dma.hbm_to_vmem [thread:$0]  %s0, 128, %s18, [#allocation3], 64, 64, 4
    $region5: #{tpu_custom_call.1} parent=1 // pred_fallthru
      _
    // Predicated region
    $region6: #{tpu_custom_call.1} parent=1 // pred_check
      _
    $region7: #{tpu_custom_call.1} parent=1 // pred_check_branch
      %25 = sbr.rel (0) target = $region9
    $region8: #{tpu_custom_call.1} parent=1 // pred_region
      %s27 = ssub.s32 128, 128
      %28 = vsyncadd [#allocation6], %s27
      %s29 = sshll.u32 [#allocation5], 4
      %s30 = int_to_ptr.vmem [resolvable:$true] %s29
      %35 = dma.hbm_to_vmem [thread:$0]  %s1, 128, %s30, [#allocation6], 64, 64, 4
    $region9: #{tpu_custom_call.1} parent=1 // pred_fallthru
      _
    // Predicated region
    $region10: #{tpu_custom_call.1} parent=1 // pred_check
      _
    $region11: #{tpu_custom_call.1} parent=1 // pred_check_branch
      %37 = sbr.rel (0) target = $region13
    $region12: #{tpu_custom_call.1} parent=1 // pred_region
      %s39 = ssub.s32 3072, 3072
      %40 = vsyncadd [#allocation6], %s39
      %s41 = sshll.u32 [#allocation7], 4
      %s42 = int_to_ptr.vmem [resolvable:$true] %s41
      %47 = dma.hbm_to_vmem [thread:$0]  %s2, 3072, %s42, [#allocation6], 192, 192, 12
    $region13: #{tpu_custom_call.1} parent=1 // pred_fallthru
      _
    // Predicated region
    $region14: #{tpu_custom_call.1} parent=1 // pred_check
      _
    $region15: #{tpu_custom_call.1} parent=1 // pred_check_branch
      %49 = sbr.rel (0) target = $region17
    $region16: #{tpu_custom_call.1} parent=1 // pred_region
      _
    $region17: #{tpu_custom_call.1} parent=1 // pred_fallthru
      _
    // Predicated region
    $region18: #{tpu_custom_call.1} parent=1 // pred_check
      _
    $region19: #{tpu_custom_call.1} parent=1 // pred_check_branch
      %51 = sbr.rel (0) target = $region21
    $region20: #{tpu_custom_call.1} parent=1 // pred_region
      %52 = dma.done [#allocation3], 128
    $region21: #{tpu_custom_call.1} parent=1 // pred_fallthru
      _
    // Predicated region
    $region22: #{tpu_custom_call.1} parent=1 // pred_check
      _
    $region23: #{tpu_custom_call.1} parent=1 // pred_check_branch
      %54 = sbr.rel (0) target = $region25
    $region24: #{tpu_custom_call.1} parent=1 // pred_region
      %55 = dma.done [#allocation6], 128
    $region25: #{tpu_custom_call.1} parent=1 // pred_fallthru
      _
    // Predicated region
    $region26: #{tpu_custom_call.1} parent=1 // pred_check
      _
    $region27: #{tpu_custom_call.1} parent=1 // pred_check_branch
      %57 = sbr.rel (0) target = $region29
    $region28: #{tpu_custom_call.1} parent=1 // pred_region
      %58 = dma.done [#allocation6], 3072
    $region29: #{tpu_custom_call.1} parent=1 // pred_fallthru
      _
    %v60 = vld [vmem:[#allocation2] sm:$0xf]
    %v61 = vld [vmem:[#allocation2 + $0x4] sm:$0xf]
    %v62 = vld [vmem:[#allocation5] sm:$0xf]
    %v63 = vld [vmem:[#allocation5 + $0x4] sm:$0xf]
    %v64 = vld [vmem:[%s3] sm:$0x1]
    %v66 = vlaneseq
    %v67 = vshrl.u32 %v66, 7
    %v68 = vsub.s32 0, %v67
    %v69 = vrot.slane %v64, %v68
    %v73 = vunpack.c.l.b16 %v60
    %v74 = vunpack.c.l.b16 %v61
    %v75 = vpack.c.b16 %v74, %v73
    %v78 = vunpack.c.l.b16 %v62
    %v79 = vunpack.c.l.b16 %v63
    %v80 = vpack.c.b16 %v79, %v78
    %vm82 = vcmask 130048
    %v84 = vsel %vm82, %v75, 0
    %86 = vmatprep.subr.bf16.mxu0 0
    %87 = vmatpush1.bf16.msra.mxu0 %v80
    %88 = vmatprep.subr.bf16.mxu0 0
    %89 = vmatpush1.bf16.msra.mxu0 0
    %90 = vmatprep.subr.bf16.mxu0 0
    %91 = vmatpush1.bf16.msra.mxu0 0
    %92 = vmatprep.subr.bf16.mxu0 0
    %93 = vmatpush1.bf16.msra.mxu0 0
    %94 = vmatprep.subr.bf16.mxu0 0
    %95 = vmatpush1.bf16.msra.mxu0 0
    %96 = vmatprep.subr.bf16.mxu0 0
    %97 = vmatpush1.bf16.msra.mxu0 0
    %98 = vmatprep.subr.bf16.mxu0 0
    %99 = vmatpush1.bf16.msra.mxu0 0
    %100 = vmatprep.subr.bf16.mxu0 0
    %101 = vmatpush1.bf16.msra.mxu0 0
    %102 = vmatprep.subr.bf16.mxu0 0
    %103 = vmatpush1.bf16.msra.mxu0 0
    %104 = vmatprep.subr.bf16.mxu0 0
    %105 = vmatpush1.bf16.msra.mxu0 0
    %106 = vmatprep.subr.bf16.mxu0 0
    %107 = vmatpush1.bf16.msra.mxu0 0
    %108 = vmatprep.subr.bf16.mxu0 0
    %109 = vmatpush1.bf16.msra.mxu0 0
    %110 = vmatprep.subr.bf16.mxu0 0
    %111 = vmatpush1.bf16.msra.mxu0 0
    %112 = vmatprep.subr.bf16.mxu0 0
    %113 = vmatpush1.bf16.msra.mxu0 0
    %114 = vmatprep.subr.bf16.mxu0 0
    %115 = vmatpush1.bf16.msra.mxu0 0
    %116 = vmatprep.subr.bf16.mxu0 0
    %117 = vmatpush1.bf16.msra.mxu0 0
    %118 = vmatprep.mubr.bf16.mxu0 0
    %119 = vmatmul.mubr.bf16.gmra.mrb[0].mxu0 %v84
    %v120 = vpop.f32.mrb[0].mxu0
    %v121 = vadd.f32 %v69, %v120
    %v122 = vpop.f32.mrb[0].mxu0
    %v123 = vpop.f32.mrb[0].mxu0
    %v124 = vadd.f32 %v69, %v123
    %v125 = vpop.f32.mrb[0].mxu0
    %126 = vdwg.mxu0
    %v127 = vmax.f32 %v121, 0.0
    %v128 = vmax.f32 %v124, 0.0
    %v129 = vpack.c.bf16 %v128, %v127
    %v130 = vld [vmem:[#allocation7] sm:$0xf]
    %v131 = vld [vmem:[#allocation7 + $0xc] sm:$0xf]
    %v132 = vld [vmem:[#allocation7 + $0x18] sm:$0xf]
    %v133 = vld [vmem:[#allocation7 + $0x24] sm:$0xf]
    %v134 = vld [vmem:[#allocation7 + $0x30] sm:$0xf]
    %v135 = vld [vmem:[#allocation7 + $0x3c] sm:$0xf]
    %v136 = vld [vmem:[#allocation7 + $0x48] sm:$0xf]
    %v137 = vld [vmem:[#allocation7 + $0x54] sm:$0xf]
    %v138 = vld [vmem:[#allocation7 + $0x60] sm:$0xf]
    %v139 = vld [vmem:[#allocation7 + $0x6c] sm:$0xf]
    %v140 = vld [vmem:[#allocation7 + $0x78] sm:$0xf]
    %v141 = vld [vmem:[#allocation7 + $0x84] sm:$0xf]
    %v142 = vld [vmem:[#allocation7 + $0x90] sm:$0xf]
    %v143 = vld [vmem:[#allocation7 + $0x9c] sm:$0xf]
    %v144 = vld [vmem:[#allocation7 + $0xa8] sm:$0xf]
    %v145 = vld [vmem:[#allocation7 + $0xb4] sm:$0xf]
    %v146 = vld [vmem:[%s3 + $0x1] sm:$0x1]
    %v148 = vlaneseq
    %v149 = vshrl.u32 %v148, 7
    %v150 = vsub.s32 0, %v149
    %v151 = vrot.slane %v146, %v150
    %v169 = vunpack.c.l.b16 %v130
    %v170 = vunpack.c.l.b16 %v131
    %v171 = vunpack.c.l.b16 %v132
    %v172 = vunpack.c.l.b16 %v133
    %v173 = vunpack.c.l.b16 %v134
    %v174 = vunpack.c.l.b16 %v135
    %v175 = vunpack.c.l.b16 %v136
    %v176 = vunpack.c.l.b16 %v137
    %v177 = vunpack.c.l.b16 %v138
    %v178 = vunpack.c.l.b16 %v139
    %v179 = vunpack.c.l.b16 %v140
    %v180 = vunpack.c.l.b16 %v141
    %v181 = vunpack.c.l.b16 %v142
    %v182 = vunpack.c.l.b16 %v143
    %v183 = vunpack.c.l.b16 %v144
    %v184 = vunpack.c.l.b16 %v145
    %v185 = vpack.c.b16 %v170, %v169
    %v186 = vpack.c.b16 %v172, %v171
    %v187 = vpack.c.b16 %v174, %v173
    %v188 = vpack.c.b16 %v176, %v175
    %v189 = vpack.c.b16 %v178, %v177
    %v190 = vpack.c.b16 %v180, %v179
    %v191 = vpack.c.b16 %v182, %v181
    %v192 = vpack.c.b16 %v184, %v183
    %201 = vmatprep.subr.bf16.mxu0 0
    %202 = vmatpush1.bf16.msra.mxu0 %v185
    %203 = vmatprep.subr.bf16.mxu0 0
    %204 = vmatpush1.bf16.msra.mxu0 %v186
    %205 = vmatprep.subr.bf16.mxu0 0
    %206 = vmatpush1.bf16.msra.mxu0 %v187
    %207 = vmatprep.subr.bf16.mxu0 0
    %208 = vmatpush1.bf16.msra.mxu0 %v188
    %209 = vmatprep.subr.bf16.mxu0 0
    %210 = vmatpush1.bf16.msra.mxu0 %v189
    %211 = vmatprep.subr.bf16.mxu0 0
    %212 = vmatpush1.bf16.msra.mxu0 %v190
    %213 = vmatprep.subr.bf16.mxu0 0
    %214 = vmatpush1.bf16.msra.mxu0 %v191
    %215 = vmatprep.subr.bf16.mxu0 0
    %216 = vmatpush1.bf16.msra.mxu0 %v192
    %217 = vmatprep.subr.bf16.mxu0 0
    %218 = vmatpush1.bf16.msra.mxu0 0
    %219 = vmatprep.subr.bf16.mxu0 0
    %220 = vmatpush1.bf16.msra.mxu0 0
    %221 = vmatprep.subr.bf16.mxu0 0
    %222 = vmatpush1.bf16.msra.mxu0 0
    %223 = vmatprep.subr.bf16.mxu0 0
    %224 = vmatpush1.bf16.msra.mxu0 0
    %225 = vmatprep.subr.bf16.mxu0 0
    %226 = vmatpush1.bf16.msra.mxu0 0
    %227 = vmatprep.subr.bf16.mxu0 0
    %228 = vmatpush1.bf16.msra.mxu0 0
    %229 = vmatprep.subr.bf16.mxu0 0
    %230 = vmatpush1.bf16.msra.mxu0 0
    %231 = vmatprep.subr.bf16.mxu0 0
    %232 = vmatpush1.bf16.msra.mxu0 0
    %233 = vmatprep.mubr.bf16.mxu0 0
    %234 = vmatmul.mubr.bf16.gmra.mrb[0].mxu0 %v129
    %v235 = vpop.f32.mrb[0].mxu0
    %v236 = vadd.f32 %v151, %v235
    %v237 = vpop.f32.mrb[0].mxu0
    %v238 = vpop.f32.mrb[0].mxu0
    %v239 = vadd.f32 %v151, %v238
    %v240 = vpop.f32.mrb[0].mxu0
    %241 = vdwg.mxu0
    %v242 = vmax.f32 %v236, 0.0
    %v243 = vmax.f32 %v239, 0.0
    %v244 = vpack.c.bf16 %v243, %v242
    %v245 = vld [vmem:[#allocation7 + $0x4] sm:$0xf]
    %v246 = vld [vmem:[#allocation7 + $0x10] sm:$0xf]
    %v247 = vld [vmem:[#allocation7 + $0x1c] sm:$0xf]
    %v248 = vld [vmem:[#allocation7 + $0x28] sm:$0xf]
    %v249 = vld [vmem:[#allocation7 + $0x34] sm:$0xf]
    %v250 = vld [vmem:[#allocation7 + $0x40] sm:$0xf]
    %v251 = vld [vmem:[#allocation7 + $0x4c] sm:$0xf]
    %v252 = vld [vmem:[#allocation7 + $0x58] sm:$0xf]
    %v253 = vld [vmem:[#allocation7 + $0x64] sm:$0xf]
    %v254 = vld [vmem:[#allocation7 + $0x70] sm:$0xf]
    %v255 = vld [vmem:[#allocation7 + $0x7c] sm:$0xf]
    %v256 = vld [vmem:[#allocation7 + $0x88] sm:$0xf]
    %v257 = vld [vmem:[#allocation7 + $0x94] sm:$0xf]
    %v258 = vld [vmem:[#allocation7 + $0xa0] sm:$0xf]
    %v259 = vld [vmem:[#allocation7 + $0xac] sm:$0xf]
    %v260 = vld [vmem:[#allocation7 + $0xb8] sm:$0xf]
    %v261 = vld [vmem:[%s3 + $0x2] sm:$0x1]
    %v263 = vlaneseq
    %v264 = vshrl.u32 %v263, 7
    %v265 = vsub.s32 0, %v264
    %v266 = vrot.slane %v261, %v265
    %v284 = vunpack.c.l.b16 %v245
    %v285 = vunpack.c.l.b16 %v246
    %v286 = vunpack.c.l.b16 %v247
    %v287 = vunpack.c.l.b16 %v248
    %v288 = vunpack.c.l.b16 %v249
    %v289 = vunpack.c.l.b16 %v250
    %v290 = vunpack.c.l.b16 %v251
    %v291 = vunpack.c.l.b16 %v252
    %v292 = vunpack.c.l.b16 %v253
    %v293 = vunpack.c.l.b16 %v254
    %v294 = vunpack.c.l.b16 %v255
    %v295 = vunpack.c.l.b16 %v256
    %v296 = vunpack.c.l.b16 %v257
    %v297 = vunpack.c.l.b16 %v258
    %v298 = vunpack.c.l.b16 %v259
    %v299 = vunpack.c.l.b16 %v260
    %v300 = vpack.c.b16 %v285, %v284
    %v301 = vpack.c.b16 %v287, %v286
    %v302 = vpack.c.b16 %v289, %v288
    %v303 = vpack.c.b16 %v291, %v290
    %v304 = vpack.c.b16 %v293, %v292
    %v305 = vpack.c.b16 %v295, %v294
    %v306 = vpack.c.b16 %v297, %v296
    %v307 = vpack.c.b16 %v299, %v298
    %316 = vmatprep.subr.bf16.mxu0 0
    %317 = vmatpush1.bf16.msra.mxu0 %v300
    %318 = vmatprep.subr.bf16.mxu0 0
    %319 = vmatpush1.bf16.msra.mxu0 %v301
    %320 = vmatprep.subr.bf16.mxu0 0
    %321 = vmatpush1.bf16.msra.mxu0 %v302
    %322 = vmatprep.subr.bf16.mxu0 0
    %323 = vmatpush1.bf16.msra.mxu0 %v303
    %324 = vmatprep.subr.bf16.mxu0 0
    %325 = vmatpush1.bf16.msra.mxu0 %v304
    %326 = vmatprep.subr.bf16.mxu0 0
    %327 = vmatpush1.bf16.msra.mxu0 %v305
    %328 = vmatprep.subr.bf16.mxu0 0
    %329 = vmatpush1.bf16.msra.mxu0 %v306
    %330 = vmatprep.subr.bf16.mxu0 0
    %331 = vmatpush1.bf16.msra.mxu0 %v307
    %332 = vmatprep.subr.bf16.mxu0 0
    %333 = vmatpush1.bf16.msra.mxu0 0
    %334 = vmatprep.subr.bf16.mxu0 0
    %335 = vmatpush1.bf16.msra.mxu0 0
    %336 = vmatprep.subr.bf16.mxu0 0
    %337 = vmatpush1.bf16.msra.mxu0 0
    %338 = vmatprep.subr.bf16.mxu0 0
    %339 = vmatpush1.bf16.msra.mxu0 0
    %340 = vmatprep.subr.bf16.mxu0 0
    %341 = vmatpush1.bf16.msra.mxu0 0
    %342 = vmatprep.subr.bf16.mxu0 0
    %343 = vmatpush1.bf16.msra.mxu0 0
    %344 = vmatprep.subr.bf16.mxu0 0
    %345 = vmatpush1.bf16.msra.mxu0 0
    %346 = vmatprep.subr.bf16.mxu0 0
    %347 = vmatpush1.bf16.msra.mxu0 0
    %348 = vmatprep.mubr.bf16.mxu0 0
    %349 = vmatmul.mubr.bf16.gmra.mrb[0].mxu0 %v244
    %v350 = vpop.f32.mrb[0].mxu0
    %v351 = vadd.f32 %v266, %v350
    %v352 = vpop.f32.mrb[0].mxu0
    %v353 = vpop.f32.mrb[0].mxu0
    %v354 = vadd.f32 %v266, %v353
    %v355 = vpop.f32.mrb[0].mxu0
    %356 = vdwg.mxu0
    %v357 = vmax.f32 %v351, 0.0
    %v358 = vmax.f32 %v354, 0.0
    %v359 = vpack.c.bf16 %v358, %v357
    %v360 = vld [vmem:[#allocation7 + $0x8] sm:$0xf]
    %v361 = vld [vmem:[#allocation7 + $0x14] sm:$0xf]
    %v362 = vld [vmem:[#allocation7 + $0x20] sm:$0xf]
    %v363 = vld [vmem:[#allocation7 + $0x2c] sm:$0xf]
    %v364 = vld [vmem:[#allocation7 + $0x38] sm:$0xf]
    %v365 = vld [vmem:[#allocation7 + $0x44] sm:$0xf]
    %v366 = vld [vmem:[#allocation7 + $0x50] sm:$0xf]
    %v367 = vld [vmem:[#allocation7 + $0x5c] sm:$0xf]
    %v368 = vld [vmem:[#allocation7 + $0x68] sm:$0xf]
    %v369 = vld [vmem:[#allocation7 + $0x74] sm:$0xf]
    %v370 = vld [vmem:[#allocation7 + $0x80] sm:$0xf]
    %v371 = vld [vmem:[#allocation7 + $0x8c] sm:$0xf]
    %v372 = vld [vmem:[#allocation7 + $0x98] sm:$0xf]
    %v373 = vld [vmem:[#allocation7 + $0xa4] sm:$0xf]
    %v374 = vld [vmem:[#allocation7 + $0xb0] sm:$0xf]
    %v375 = vld [vmem:[#allocation7 + $0xbc] sm:$0xf]
    %v376 = vld [vmem:[%s3 + $0x3] sm:$0x1]
    %v378 = vlaneseq
    %v379 = vshrl.u32 %v378, 7
    %v380 = vsub.s32 0, %v379
    %v381 = vrot.slane %v376, %v380
    %v399 = vunpack.c.l.b16 %v360
    %v400 = vunpack.c.l.b16 %v361
    %v401 = vunpack.c.l.b16 %v362
    %v402 = vunpack.c.l.b16 %v363
    %v403 = vunpack.c.l.b16 %v364
    %v404 = vunpack.c.l.b16 %v365
    %v405 = vunpack.c.l.b16 %v366
    %v406 = vunpack.c.l.b16 %v367
    %v407 = vunpack.c.l.b16 %v368
    %v408 = vunpack.c.l.b16 %v369
    %v409 = vunpack.c.l.b16 %v370
    %v410 = vunpack.c.l.b16 %v371
    %v411 = vunpack.c.l.b16 %v372
    %v412 = vunpack.c.l.b16 %v373
    %v413 = vunpack.c.l.b16 %v374
    %v414 = vunpack.c.l.b16 %v375
    %v415 = vpack.c.b16 %v400, %v399
    %v416 = vpack.c.b16 %v402, %v401
    %v417 = vpack.c.b16 %v404, %v403
    %v418 = vpack.c.b16 %v406, %v405
    %v419 = vpack.c.b16 %v408, %v407
    %v420 = vpack.c.b16 %v410, %v409
    %v421 = vpack.c.b16 %v412, %v411
    %v422 = vpack.c.b16 %v414, %v413
    %431 = vmatprep.subr.bf16.mxu0 0
    %432 = vmatpush1.bf16.msra.mxu0 %v415
    %433 = vmatprep.subr.bf16.mxu0 0
    %434 = vmatpush1.bf16.msra.mxu0 %v416
    %435 = vmatprep.subr.bf16.mxu0 0
    %436 = vmatpush1.bf16.msra.mxu0 %v417
    %437 = vmatprep.subr.bf16.mxu0 0
    %438 = vmatpush1.bf16.msra.mxu0 %v418
    %439 = vmatprep.subr.bf16.mxu0 0
    %440 = vmatpush1.bf16.msra.mxu0 %v419
    %441 = vmatprep.subr.bf16.mxu0 0
    %442 = vmatpush1.bf16.msra.mxu0 %v420
    %443 = vmatprep.subr.bf16.mxu0 0
    %444 = vmatpush1.bf16.msra.mxu0 %v421
    %445 = vmatprep.subr.bf16.mxu0 0
    %446 = vmatpush1.bf16.msra.mxu0 %v422
    %447 = vmatprep.subr.bf16.mxu0 0
    %448 = vmatpush1.bf16.msra.mxu0 0
    %449 = vmatprep.subr.bf16.mxu0 0
    %450 = vmatpush1.bf16.msra.mxu0 0
    %451 = vmatprep.subr.bf16.mxu0 0
    %452 = vmatpush1.bf16.msra.mxu0 0
    %453 = vmatprep.subr.bf16.mxu0 0
    %454 = vmatpush1.bf16.msra.mxu0 0
    %455 = vmatprep.subr.bf16.mxu0 0
    %456 = vmatpush1.bf16.msra.mxu0 0
    %457 = vmatprep.subr.bf16.mxu0 0
    %458 = vmatpush1.bf16.msra.mxu0 0
    %459 = vmatprep.subr.bf16.mxu0 0
    %460 = vmatpush1.bf16.msra.mxu0 0
    %461 = vmatprep.subr.bf16.mxu0 0
    %462 = vmatpush1.bf16.msra.mxu0 0
    %463 = vmatprep.mubr.bf16.mxu0 0
    %464 = vmatmul.mubr.bf16.gmra.mrb[0].mxu0 %v359
    %v465 = vpop.f32.mrb[0].mxu0
    %v466 = vadd.f32 %v381, %v465
    %v467 = vpop.f32.mrb[0].mxu0
    %v468 = vpop.f32.mrb[0].mxu0
    %v469 = vadd.f32 %v381, %v468
    %v470 = vpop.f32.mrb[0].mxu0
    %471 = vdwg.mxu0
    %472 = vst [vmem:[#allocation8] sm:$0xff] %v466
    %473 = vst [vmem:[#allocation8 + $0x8] sm:$0xff] %v469
    // Predicated region
    $region30: #{tpu_custom_call.1} parent=1 // pred_check
      _
    $region31: #{tpu_custom_call.1} parent=1 // pred_check_branch
      %475 = sbr.rel (0) target = $region33
    $region32: #{tpu_custom_call.1} parent=1 // pred_region
      %s477 = ssub.s32 256, 256
      %478 = vsyncadd [#allocation4], %s477
      %s479 = sshll.u32 [#allocation8], 4
      %s480 = int_to_ptr.vmem [resolvable:$true] %s479
      %485 = dma.vmem_to_hbm [thread:$0]  %s480, 256, %s4, [#allocation4], 128, 128, 8
    $region33: #{tpu_custom_call.1} parent=1 // pred_fallthru
      _
    // Predicated region
    $region34: #{tpu_custom_call.1} parent=1 // pred_check
      _
    $region35: #{tpu_custom_call.1} parent=1 // pred_check_branch
      %487 = sbr.rel (0) target = $region37
    $region36: #{tpu_custom_call.1} parent=1 // pred_region
      %488 = dma.done [#allocation4], 256
    $region37: #{tpu_custom_call.1} parent=1 // pred_fallthru
      _
    %489 = vsyncpa [#allocation3], 1
    %490 = vsyncpa [#allocation6], 1
    %491 = vsyncpa [#allocation4], 1

</llo_original>
